<compile_context>
chip_gen: v5e
topology: v5e:2x2
jax: 0.10.0
libtpu: 0.0.40
codegen_flags: <defaults>
</compile_context>

<pallas_src>
import functools

import jax
import jax.numpy as jnp
from jax import lax
from jax.experimental import pallas as pl
from jax.experimental.pallas import tpu as pltpu


def _round_up(x, m):
    return (x + m - 1) // m * m


def _cross_attention_kernel(hp, m1_ref, m2_ref, wq_ref, bq_ref,
                            wkv_ref, bkv_ref, out_ref):
    m1 = m1_ref[0]                       # (N1, E)
    m2 = m2_ref[0]                       # (N2, E)

    # Q projection (1/sqrt(H) scale already folded into wq/bq).   (N1, HP)
    q = jnp.dot(m1, wq_ref[...], preferred_element_type=jnp.float32) + bq_ref[...]
    # Fused K/V projection.                                       (N2, 2*HP)
    kv = jnp.dot(m2, wkv_ref[...], preferred_element_type=jnp.float32) + bkv_ref[...]
    k = kv[:, :hp]
    v = kv[:, hp:]

    # Scores: contract feature axes directly (no k.T / XLU transpose). (N1, N2)
    scores = lax.dot_general(q, k, (((1,), (1,)), ((), ())),
                             preferred_element_type=jnp.float32)

    # Numerically stable softmax over the last axis.
    s_max = jnp.max(scores, axis=-1, keepdims=True)
    p = jnp.exp(scores - s_max)
    p = p * pl.reciprocal(jnp.sum(p, axis=-1, keepdims=True), approx=True)

    # Attention output — lane-dense (N1, HP) store.
    out_ref[0] = jnp.dot(p, v, preferred_element_type=jnp.float32)


def prepare_params(params, embed_dim, hidden_dim):
    """One-time param transform: fold scale into Q, fuse K/V, pad H -> HP."""
    hp = _round_up(max(hidden_dim, 128), 128)
    scale = 1.0 / float(hidden_dim) ** 0.5
    pad_h = hp - hidden_dim

    def pad_w(w):
        return jnp.pad(w, ((0, 0), (0, pad_h)))

    def pad_b(b):
        return jnp.pad(b.reshape(1, -1), ((0, 0), (0, pad_h)))

    return {
        "wq": pad_w(params["wq"] * scale),
        "bq": pad_b(params["bq"] * scale),
        "wkv": jnp.concatenate([pad_w(params["wk"]), pad_w(params["wv"])], axis=1),
        "bkv": jnp.concatenate([pad_b(params["bk"]), pad_b(params["bv"])], axis=1),
        "hp": hp,
    }


def cross_attention_batched(molecule1, molecule2, prepped, hidden_dim):
    """molecule1: (B, N1, E), molecule2: (B, N2, E) -> (B, N1, H)."""
    b, n1, e = molecule1.shape
    _, n2, _ = molecule2.shape
    hp = prepped["hp"]

    kernel = functools.partial(_cross_attention_kernel, hp)

    flops = b * (2 * n1 * e * hp + 2 * n2 * e * 2 * hp + 4 * n1 * n2 * hp)
    bytes_accessed = 4 * (b * (n1 * e + n2 * e + n1 * hp)
                          + e * hp + hp + e * 2 * hp + 2 * hp)
    cost = pl.CostEstimate(flops=flops,
                           transcendentals=b * n1 * n2,
                           bytes_accessed=bytes_accessed)

    grid_spec = pltpu.PrefetchScalarGridSpec(
        num_scalar_prefetch=0,
        grid=(b,),
        in_specs=[
            pl.BlockSpec((1, n1, e), lambda i: (i, 0, 0)),       # molecule1
            pl.BlockSpec((1, n2, e), lambda i: (i, 0, 0)),       # molecule2
            pl.BlockSpec((e, hp), lambda i: (0, 0)),             # wq (scaled, padded)
            pl.BlockSpec((1, hp), lambda i: (0, 0)),             # bq
            pl.BlockSpec((e, 2 * hp), lambda i: (0, 0)),         # wkv (fused K|V)
            pl.BlockSpec((1, 2 * hp), lambda i: (0, 0)),         # bkv
        ],
        out_specs=pl.BlockSpec((1, n1, hp), lambda i: (i, 0, 0)),
    )

    out_padded = pl.pallas_call(
        kernel,
        out_shape=jax.ShapeDtypeStruct((b, n1, hp), jnp.float32),
        grid_spec=grid_spec,
        compiler_params=pltpu.CompilerParams(
            dimension_semantics=("parallel",),
            vmem_limit_bytes=32 * 1024 * 1024,
        ),
        cost_estimate=cost,
    )(molecule1, molecule2,
      prepped["wq"], prepped["bq"], prepped["wkv"], prepped["bkv"])

    # Drop the zero-padded hidden columns (cheap XLA slice outside the kernel).
    return out_padded[:, :, :hidden_dim]


def cross_attention(molecule1, molecule2, params, hidden_dim):
    """Single-pair forward matching the PyTorch module's signature."""
    embed_dim = molecule1.shape[-1]
    prepped = prepare_params(params, embed_dim, hidden_dim)
    out = cross_attention_batched(molecule1[None], molecule2[None],
                                  prepped, hidden_dim)
    return out[0]


def cross_attention_reference(molecule1, molecule2, params, hidden_dim):
    """Pure-JAX reference mirroring the PyTorch forward."""
    q = molecule1 @ params["wq"] + params["bq"]
    k = molecule2 @ params["wk"] + params["bk"]
    v = molecule2 @ params["wv"] + params["bv"]
    scores = (q @ k.T) / jnp.sqrt(jnp.float32(hidden_dim))
    probs = jax.nn.softmax(scores, axis=-1)
    return probs @ v


if __name__ == "__main__":
    embed_dim = 32
    hidden_dim = 32
    n1, n2 = 8, 8
    batch = 4  # molecule pairs processed in one gridded pallas_call

    key = jax.random.PRNGKey(0)
    k_m1, k_m2, k_wq, k_bq, k_wk, k_bk, k_wv, k_bv = jax.random.split(key, 8)

    m1_batch = jax.random.normal(k_m1, (batch, n1, embed_dim), dtype=jnp.float32)
    m2_batch = jax.random.normal(k_m2, (batch, n2, embed_dim), dtype=jnp.float32)

    bound = 1.0 / embed_dim ** 0.5
    params = {
        "wq": jax.random.uniform(k_wq, (embed_dim, hidden_dim),
                                 minval=-bound, maxval=bound, dtype=jnp.float32),
        "bq": jax.random.uniform(k_bq, (hidden_dim,),
                                 minval=-bound, maxval=bound, dtype=jnp.float32),
        "wk": jax.random.uniform(k_wk, (embed_dim, hidden_dim),
                                 minval=-bound, maxval=bound, dtype=jnp.float32),
        "bk": jax.random.uniform(k_bk, (hidden_dim,),
                                 minval=-bound, maxval=bound, dtype=jnp.float32),
        "wv": jax.random.uniform(k_wv, (embed_dim, hidden_dim),
                                 minval=-bound, maxval=bound, dtype=jnp.float32),
        "bv": jax.random.uniform(k_bv, (hidden_dim,),
                                 minval=-bound, maxval=bound, dtype=jnp.float32),
    }

    # Batched (gridded) path.
    prepped = prepare_params(params, embed_dim, hidden_dim)
    out_b = jax.block_until_ready(
        cross_attention_batched(m1_batch, m2_batch, prepped, hidden_dim))
    assert out_b.shape == (batch, n1, hidden_dim)
    for i in range(batch):
        ref_i = cross_attention_reference(m1_batch[i], m2_batch[i], params,
                                          hidden_dim)
        # approx reciprocal in softmax -> slightly relaxed tolerance.
        assert jnp.allclose(out_b[i], ref_i, atol=5e-3, rtol=5e-3), \
            f"batched mismatch vs reference at pair {i}"

    # Single-pair path (original module semantics).
    out1 = jax.block_until_ready(
        cross_attention(m1_batch[0], m2_batch[0], params, hidden_dim))
    ref1 = cross_attention_reference(m1_batch[0], m2_batch[0], params,
                                     hidden_dim)
    assert out1.shape == (n1, hidden_dim)
    assert jnp.allclose(out1, ref1, atol=5e-3, rtol=5e-3), \
        "single-pair mismatch vs reference"

    print("KERNEL_OK")
</pallas_src>

<mosaic_0001>
module attributes {stable_mosaic.version = 11 : i64} {
  func.func @_cross_attention_kernel(%arg0: i32, %arg1: memref<1x8x32xf32, #tpu.memory_space<vmem>>, %arg2: memref<1x8x32xf32, #tpu.memory_space<vmem>>, %arg3: memref<32x128xf32, #tpu.memory_space<vmem>>, %arg4: memref<1x128xf32, #tpu.memory_space<vmem>>, %arg5: memref<32x256xf32, #tpu.memory_space<vmem>>, %arg6: memref<1x256xf32, #tpu.memory_space<vmem>>, %arg7: memref<1x8x128xf32, #tpu.memory_space<vmem>>) attributes {dimension_semantics = [#tpu.dimension_semantics<parallel>], iteration_bounds = array<i64: 4>, scalar_prefetch = 0 : i64, scratch_operands = 0 : i64, tpu.core_type = #tpu.core_type<tc>, window_params = [{transform_indices = @transform_0, window_bounds = array<i64: 1, 8, 32>}, {transform_indices = @transform_1, window_bounds = array<i64: 1, 8, 32>}, {pipeline_mode = #tpu.pipeline_mode<synchronous>, transform_indices = @transform_2, window_bounds = array<i64: 32, 128>}, {pipeline_mode = #tpu.pipeline_mode<synchronous>, transform_indices = @transform_3, window_bounds = array<i64: 1, 128>}, {pipeline_mode = #tpu.pipeline_mode<synchronous>, transform_indices = @transform_4, window_bounds = array<i64: 32, 256>}, {pipeline_mode = #tpu.pipeline_mode<synchronous>, transform_indices = @transform_5, window_bounds = array<i64: 1, 256>}, {transform_indices = @transform_6, window_bounds = array<i64: 1, 8, 128>}]} {
    %c0 = arith.constant 0 : index
    %c0_0 = arith.constant 0 : index
    %c0_1 = arith.constant 0 : index
    %0 = vector.load %arg1[%c0, %c0_0, %c0_1] : memref<1x8x32xf32, #tpu.memory_space<vmem>>, vector<1x8x32xf32>
    %1 = vector.shape_cast %0 : vector<1x8x32xf32> to vector<8x32xf32>
    %c0_2 = arith.constant 0 : index
    %c0_3 = arith.constant 0 : index
    %c0_4 = arith.constant 0 : index
    %2 = vector.load %arg2[%c0_2, %c0_3, %c0_4] : memref<1x8x32xf32, #tpu.memory_space<vmem>>, vector<1x8x32xf32>
    %3 = vector.shape_cast %2 : vector<1x8x32xf32> to vector<8x32xf32>
    %c0_5 = arith.constant 0 : index
    %c0_6 = arith.constant 0 : index
    %4 = vector.load %arg3[%c0_5, %c0_6] : memref<32x128xf32, #tpu.memory_space<vmem>>, vector<32x128xf32>
    %cst = arith.constant dense<0.000000e+00> : vector<8x128xf32>
    %5 = tpu.matmul %1, %4, %cst {dimension_numbers = #tpu.dot_dimension_numbers<[1], [0], [0], [1], [0, 0, 1, 1], [], []>} : vector<8x32xf32>, vector<32x128xf32>, vector<8x128xf32> -> vector<8x128xf32>
    %c0_7 = arith.constant 0 : index
    %c0_8 = arith.constant 0 : index
    %6 = vector.load %arg4[%c0_7, %c0_8] : memref<1x128xf32, #tpu.memory_space<vmem>>, vector<1x128xf32>
    %7 = vector.broadcast %6 : vector<1x128xf32> to vector<8x128xf32>
    %8 = arith.addf %5, %7 : vector<8x128xf32>
    %c0_9 = arith.constant 0 : index
    %c0_10 = arith.constant 0 : index
    %9 = vector.load %arg5[%c0_9, %c0_10] : memref<32x256xf32, #tpu.memory_space<vmem>>, vector<32x256xf32>
    %cst_11 = arith.constant dense<0.000000e+00> : vector<8x256xf32>
    %10 = tpu.matmul %3, %9, %cst_11 {dimension_numbers = #tpu.dot_dimension_numbers<[1], [0], [0], [1], [0, 0, 1, 1], [], []>} : vector<8x32xf32>, vector<32x256xf32>, vector<8x256xf32> -> vector<8x256xf32>
    %c0_12 = arith.constant 0 : index
    %c0_13 = arith.constant 0 : index
    %11 = vector.load %arg6[%c0_12, %c0_13] : memref<1x256xf32, #tpu.memory_space<vmem>>, vector<1x256xf32>
    %12 = vector.broadcast %11 : vector<1x256xf32> to vector<8x256xf32>
    %13 = arith.addf %10, %12 : vector<8x256xf32>
    %14 = vector.extract_strided_slice %13 {offsets = [0, 0], sizes = [8, 128], strides = [1, 1]} : vector<8x256xf32> to vector<8x128xf32>
    %15 = vector.extract_strided_slice %13 {offsets = [0, 128], sizes = [8, 128], strides = [1, 1]} : vector<8x256xf32> to vector<8x128xf32>
    %cst_14 = arith.constant dense<0.000000e+00> : vector<8x8xf32>
    %16 = tpu.matmul %8, %14, %cst_14 {dimension_numbers = #tpu.dot_dimension_numbers<[1], [1], [0], [0], [0, 0, 1, 0], [], []>} : vector<8x128xf32>, vector<8x128xf32>, vector<8x8xf32> -> vector<8x8xf32>
    %cst_15 = arith.constant dense<0xFF800000> : vector<8xf32>
    %17 = vector.multi_reduction <maximumf>, %16, %cst_15 [1] : vector<8x8xf32> to vector<8xf32>
    %18 = vector.shape_cast %17 : vector<8xf32> to vector<8x1xf32>
    %19 = vector.broadcast %18 : vector<8x1xf32> to vector<8x8xf32>
    %20 = arith.subf %16, %19 : vector<8x8xf32>
    %21 = math.exp %20 : vector<8x8xf32>
    %cst_16 = arith.constant dense<0.000000e+00> : vector<8xf32>
    %22 = vector.multi_reduction <add>, %21, %cst_16 [1] : vector<8x8xf32> to vector<8xf32>
    %23 = vector.shape_cast %22 : vector<8xf32> to vector<8x1xf32>
    %24 = tpu.reciprocal %23 {approx = true} : vector<8x1xf32> -> vector<8x1xf32>
    %25 = vector.broadcast %24 : vector<8x1xf32> to vector<8x8xf32>
    %26 = arith.mulf %21, %25 : vector<8x8xf32>
    %cst_17 = arith.constant dense<0.000000e+00> : vector<8x128xf32>
    %27 = tpu.matmul %26, %15, %cst_17 {dimension_numbers = #tpu.dot_dimension_numbers<[1], [0], [0], [1], [0, 0, 1, 1], [], []>} : vector<8x8xf32>, vector<8x128xf32>, vector<8x128xf32> -> vector<8x128xf32>
    %c0_18 = arith.constant 0 : index
    %c0_19 = arith.constant 0 : index
    %c0_20 = arith.constant 0 : index
    %28 = vector.load %arg7[%c0_18, %c0_19, %c0_20] : memref<1x8x128xf32, #tpu.memory_space<vmem>>, vector<1x8x128xf32>
    %29 = vector.shape_cast %28 : vector<1x8x128xf32> to vector<8x128xf32>
    %30 = vector.shape_cast %27 : vector<8x128xf32> to vector<1x8x128xf32>
    tpu.vector_store %arg7[%c0_18, %c0_19, %c0_20], %30 {strides = array<i32>} : memref<1x8x128xf32, #tpu.memory_space<vmem>>, vector<1x8x128xf32>,
    return
  }
  func.func @transform_0(%arg0: i32) -> (i32, i32, i32) {
    %c0_i32 = arith.constant 0 : i32
    %c0_i32_0 = arith.constant 0 : i32
    %c0_i32_1 = arith.constant 0 : i32
    return %arg0, %c0_i32, %c0_i32_0 : i32, i32, i32
  }
  func.func @transform_1(%arg0: i32) -> (i32, i32, i32) {
    %c0_i32 = arith.constant 0 : i32
    %c0_i32_0 = arith.constant 0 : i32
    %c0_i32_1 = arith.constant 0 : i32
    return %arg0, %c0_i32, %c0_i32_0 : i32, i32, i32
  }
  func.func @transform_2(%arg0: i32) -> (i32, i32) {
    %c0_i32 = arith.constant 0 : i32
    %c0_i32_0 = arith.constant 0 : i32
    %c0_i32_1 = arith.constant 0 : i32
    return %c0_i32, %c0_i32_0 : i32, i32
  }
  func.func @transform_3(%arg0: i32) -> (i32, i32) {
    %c0_i32 = arith.constant 0 : i32
    %c0_i32_0 = arith.constant 0 : i32
    %c0_i32_1 = arith.constant 0 : i32
    return %c0_i32, %c0_i32_0 : i32, i32
  }
  func.func @transform_4(%arg0: i32) -> (i32, i32) {
    %c0_i32 = arith.constant 0 : i32
    %c0_i32_0 = arith.constant 0 : i32
    %c0_i32_1 = arith.constant 0 : i32
    return %c0_i32, %c0_i32_0 : i32, i32
  }
  func.func @transform_5(%arg0: i32) -> (i32, i32) {
    %c0_i32 = arith.constant 0 : i32
    %c0_i32_0 = arith.constant 0 : i32
    %c0_i32_1 = arith.constant 0 : i32
    return %c0_i32, %c0_i32_0 : i32, i32
  }
  func.func @transform_6(%arg0: i32) -> (i32, i32, i32) {
    %c0_i32 = arith.constant 0 : i32
    %c0_i32_0 = arith.constant 0 : i32
    %c0_i32_1 = arith.constant 0 : i32
    return %arg0, %c0_i32, %c0_i32_0 : i32, i32, i32
  }
}

</mosaic_0001>

<llo_original>
// kernel: tpu_custom_call.1
$region0: #{tpu_custom_call.1}
  #allocation0 [shape = 'u32[]', space=smem, size = 0x4, offset = 0x4, fixed_abs, tag = 'smem constant byte address 0x4 - core index']
  #allocation1 [shape = 'u32[72,128]{1,0:T(1,128)}', space=vmem, size = 0x9000, scoped, tag = 'internal scratch']
  %s0 = inlined_call_operand.hbm [shape: f32[4,8,32], index: 0, kind: input, shape index: {}]
  %s1 = inlined_call_operand.hbm [shape: f32[4,8,32], index: 1, kind: input, shape index: {}]
  %s2 = inlined_call_operand.hbm [shape: f32[32,128], index: 2, kind: input, shape index: {}]
  %s3 = inlined_call_operand.vmem [shape: f32[1,128], index: 3, kind: input, shape index: {}]
  %s4 = inlined_call_operand.hbm [shape: f32[32,256], index: 4, kind: input, shape index: {}]
  %s5 = inlined_call_operand.vmem [shape: f32[1,256], index: 5, kind: input, shape index: {}]
  %s6 = inlined_call_operand.hbm [shape: f32[4,8,128], index: 6, kind: output, shape index: {}]
  %s7 = sld [smem:[#allocation0]]
  $region73: #{tpu_custom_call.1} parent=0
    _
  %s9 = ssub.s32 1, %s7
  %s10 = scalar_select 0, %s9, %s7
  $region1: #{tpu_custom_call.1} parent=0
    #allocation2 [shape = 'u8[8192]{0}', space=vmem, size = 0x2000, scoped, tag = 'input window, operand 0']
    #allocation3 [shape = 's32[2]{0}', space=sflag, size = 0x8, scoped, tag = 'scoped memory for tpu_custom_call.1']
    #allocation4 [shape = 's32[2]{0}', space=sflag, size = 0x8, scoped, tag = 'scoped memory for tpu_custom_call.1']
    #allocation5 [shape = 'u8[8192]{0}', space=vmem, size = 0x2000, scoped, tag = 'input window, operand 1']
    #allocation6 [shape = 's32[2]{0}', space=sflag, size = 0x8, scoped, tag = 'scoped memory for tpu_custom_call.1']
    #allocation7 [shape = 'u8[16384]{0}', space=vmem, size = 0x4000, scoped, tag = 'input window, operand 2, single buffered']
    #allocation8 [shape = 'u8[32768]{0}', space=vmem, size = 0x8000, scoped, tag = 'input window, operand 4, single buffered']
    #allocation9 [shape = 's32[1]{0}', space=sflag, size = 0x4, scoped, tag = 'scoped memory for tpu_custom_call.1']
    #allocation10 [shape = 'u8[8192]{0}', space=vmem, size = 0x2000, scoped, tag = 'output window, operand 0']
    %11 = vsyncpa [#allocation3], 0
    %s12 = scalar_lea.sflag [#allocation3], 1
    %13 = vsyncpa %s12, 0
    %14 = vsyncpa [#allocation6], 0
    %s15 = scalar_lea.sflag [#allocation6], 1
    %16 = vsyncpa %s15, 0
    %17 = vsyncpa [#allocation9], 0
    %18 = vsyncpa [#allocation4], 0
    %s19 = scalar_lea.sflag [#allocation4], 1
    %20 = vsyncpa %s19, 0
    loop: start=0, step=1, limit=6
    $region2: #{tpu_custom_call.1} parent=1 // loop_pre_header
      _
    $region3: #{tpu_custom_call.1} parent=1 // loop_header
      %s22 = sphi 0, %s26
      %p23 = scmp.ge.s32.totalorder %s22, 6
      %s32 = sphi 0, %s34
      %s35 = sphi 0, %s32
      %s36 = sphi 0, %s35
      %s52 = sphi 0, %s36
      %s58 = sphi 0, %s60
      %s61 = sphi 0, %s58
      %s62 = sphi 0, %s61
      %s78 = sphi 0, %s62
      %s82 = sphi 0, %s82
      %s84 = sphi 0, %s82
      %s85 = sphi 0, %s84
      %s99 = sphi 0, %s85
      %s103 = sphi 0, %s103
      %s105 = sphi 0, %s103
      %s106 = sphi 0, %s105
      %s120 = sphi 0, %s106
      %s124 = sphi 0, %s124
      %s126 = sphi 0, %s124
      %s127 = sphi 0, %s126
      %s141 = sphi 0, %s127
      %s145 = sphi 0, %s145
      %s147 = sphi 0, %s145
      %s148 = sphi 0, %s147
      %s162 = sphi 0, %s148
      %s168 = sphi 0, %s170
      %s171 = sphi 0, %s168
      %s172 = sphi 0, %s171
      %s188 = sphi 0, %s172
    $region4: #{tpu_custom_call.1} parent=1 // loop_header_branch
      %25 = sbr.rel (%p23) target = $region8
    $region5: #{tpu_custom_call.1} parent=1 // loop_body
      %s27 = ssub.s32 %s22, 1
      %s28 = ssub.s32 %s22, 2
      %s29 = sadd.s32 %s22, 1
      %s30 = ssub.s32 %s22, %s29
      %p31 = scmp.eq.s32.totalorder %s30, 0
      %s33 = sadd.s32 %s32, 1
      %s34 = scalar_select %p31, %s32, %s33
      %p37 = pneg %p31
      %p38 = scmp.eq.s32.totalorder %s22, 3
      %p39 = por %p37, %p38
      %p40 = scmp.ne.s32.totalorder %s32, %s35
      %p41 = scmp.eq.s32.totalorder %s22, 0
      %p42 = por %p40, %p41
      %p43 = scmp.ne.s32.totalorder %s32, %s35
      %p44 = scmp.eq.s32.totalorder %s27, 3
      %p45 = por %p43, %p44
      %p46 = scmp.ne.s32.totalorder %s35, %s36
      %p47 = scmp.eq.s32.totalorder %s27, 0
      %p48 = por %p46, %p47
      %p49 = scmp.ne.s32.totalorder %s35, %s36
      %p50 = scmp.eq.s32.totalorder %s28, 3
      %p51 = por %p49, %p50
      %p53 = scmp.ne.s32.totalorder %s36, %s52
      %p54 = scmp.eq.s32.totalorder %s28, 0
      %p55 = por %p53, %p54
      %s56 = ssub.s32 %s22, %s29
      %p57 = scmp.eq.s32.totalorder %s56, 0
      %s59 = sadd.s32 %s58, 1
      %s60 = scalar_select %p57, %s58, %s59
      %p63 = pneg %p57
      %p64 = scmp.eq.s32.totalorder %s22, 3
      %p65 = por %p63, %p64
      %p66 = scmp.ne.s32.totalorder %s58, %s61
      %p67 = scmp.eq.s32.totalorder %s22, 0
      %p68 = por %p66, %p67
      %p69 = scmp.ne.s32.totalorder %s58, %s61
      %p70 = scmp.eq.s32.totalorder %s27, 3
      %p71 = por %p69, %p70
      %p72 = scmp.ne.s32.totalorder %s61, %s62
      %p73 = scmp.eq.s32.totalorder %s27, 0
      %p74 = por %p72, %p73
      %p75 = scmp.ne.s32.totalorder %s61, %s62
      %p76 = scmp.eq.s32.totalorder %s28, 3
      %p77 = por %p75, %p76
      %p79 = scmp.ne.s32.totalorder %s62, %s78
      %p80 = scmp.eq.s32.totalorder %s28, 0
      %p81 = por %p79, %p80
      %s83 = sadd.s32 %s82, 1
      %p86 = scmp.eq.s32.totalorder %s22, 3
      %p87 = scmp.ne.s32.totalorder %s82, %s84
      %p88 = scmp.eq.s32.totalorder %s22, 0
      %p89 = por %p87, %p88
      %p90 = scmp.ne.s32.totalorder %s82, %s84
      %p91 = scmp.eq.s32.totalorder %s27, 3
      %p92 = por %p90, %p91
      %p93 = scmp.ne.s32.totalorder %s84, %s85
      %p94 = scmp.eq.s32.totalorder %s27, 0
      %p95 = por %p93, %p94
      %p96 = scmp.ne.s32.totalorder %s84, %s85
      %p97 = scmp.eq.s32.totalorder %s28, 3
      %p98 = por %p96, %p97
      %p100 = scmp.ne.s32.totalorder %s85, %s99
      %p101 = scmp.eq.s32.totalorder %s28, 0
      %p102 = por %p100, %p101
      %s104 = sadd.s32 %s103, 1
      %p107 = scmp.eq.s32.totalorder %s22, 3
      %p108 = scmp.ne.s32.totalorder %s103, %s105
      %p109 = scmp.eq.s32.totalorder %s22, 0
      %p110 = por %p108, %p109
      %p111 = scmp.ne.s32.totalorder %s103, %s105
      %p112 = scmp.eq.s32.totalorder %s27, 3
      %p113 = por %p111, %p112
      %p114 = scmp.ne.s32.totalorder %s105, %s106
      %p115 = scmp.eq.s32.totalorder %s27, 0
      %p116 = por %p114, %p115
      %p117 = scmp.ne.s32.totalorder %s105, %s106
      %p118 = scmp.eq.s32.totalorder %s28, 3
      %p119 = por %p117, %p118
      %p121 = scmp.ne.s32.totalorder %s106, %s120
      %p122 = scmp.eq.s32.totalorder %s28, 0
      %p123 = por %p121, %p122
      %s125 = sadd.s32 %s124, 1
      %p128 = scmp.eq.s32.totalorder %s22, 3
      %p129 = scmp.ne.s32.totalorder %s124, %s126
      %p130 = scmp.eq.s32.totalorder %s22, 0
      %p131 = por %p129, %p130
      %p132 = scmp.ne.s32.totalorder %s124, %s126
      %p133 = scmp.eq.s32.totalorder %s27, 3
      %p134 = por %p132, %p133
      %p135 = scmp.ne.s32.totalorder %s126, %s127
      %p136 = scmp.eq.s32.totalorder %s27, 0
      %p137 = por %p135, %p136
      %p138 = scmp.ne.s32.totalorder %s126, %s127
      %p139 = scmp.eq.s32.totalorder %s28, 3
      %p140 = por %p138, %p139
      %p142 = scmp.ne.s32.totalorder %s127, %s141
      %p143 = scmp.eq.s32.totalorder %s28, 0
      %p144 = por %p142, %p143
      %s146 = sadd.s32 %s145, 1
      %p149 = scmp.eq.s32.totalorder %s22, 3
      %p150 = scmp.ne.s32.totalorder %s145, %s147
      %p151 = scmp.eq.s32.totalorder %s22, 0
      %p152 = por %p150, %p151
      %p153 = scmp.ne.s32.totalorder %s145, %s147
      %p154 = scmp.eq.s32.totalorder %s27, 3
      %p155 = por %p153, %p154
      %p156 = scmp.ne.s32.totalorder %s147, %s148
      %p157 = scmp.eq.s32.totalorder %s27, 0
      %p158 = por %p156, %p157
      %p159 = scmp.ne.s32.totalorder %s147, %s148
      %p160 = scmp.eq.s32.totalorder %s28, 3
      %p161 = por %p159, %p160
      %p163 = scmp.ne.s32.totalorder %s148, %s162
      %p164 = scmp.eq.s32.totalorder %s28, 0
      %p165 = por %p163, %p164
      %s166 = ssub.s32 %s22, %s29
      %p167 = scmp.eq.s32.totalorder %s166, 0
      %s169 = sadd.s32 %s168, 1
      %s170 = scalar_select %p167, %s168, %s169
      %p173 = pneg %p167
      %p174 = scmp.eq.s32.totalorder %s22, 3
      %p175 = por %p173, %p174
      %p176 = scmp.ne.s32.totalorder %s168, %s171
      %p177 = scmp.eq.s32.totalorder %s22, 0
      %p178 = por %p176, %p177
      %p179 = scmp.ne.s32.totalorder %s168, %s171
      %p180 = scmp.eq.s32.totalorder %s27, 3
      %p181 = por %p179, %p180
      %p182 = scmp.ne.s32.totalorder %s171, %s172
      %p183 = scmp.eq.s32.totalorder %s27, 0
      %p184 = por %p182, %p183
      %p185 = scmp.ne.s32.totalorder %s171, %s172
      %p186 = scmp.eq.s32.totalorder %s28, 3
      %p187 = por %p185, %p186
      %p189 = scmp.ne.s32.totalorder %s172, %s188
      %p190 = scmp.eq.s32.totalorder %s28, 0
      %p191 = por %p189, %p190
      %p192 = scmp.le.s32.totalorder 1, %s22
      %p193 = scmp.lt.s32.totalorder %s22, 5
      %p194 = pnand %p192, %p193
      %p195 = pneg %p194
      // Predicated region
      $region9: #{tpu_custom_call.1} parent=5 // pred_check
        _
      $region10: #{tpu_custom_call.1} parent=5 // pred_check_branch
        %197 = sbr.rel (%p194) target = $region12
      $region11: #{tpu_custom_call.1} parent=5 // pred_region
        %s198 = ssub.s32 %s22, 1
        // Predicated region
        $region13: #{tpu_custom_call.1} parent=11 // pred_check
          %p199 = pneg %p95
        $region14: #{tpu_custom_call.1} parent=11 // pred_check_branch
          %201 = sbr.rel (%p199) target = $region16
        $region15: #{tpu_custom_call.1} parent=11 // pred_region
          %203 = vsyncadd [#allocation6], 0
          %s204 = sshll.u32 %s2, 4
          %s205 = int_to_ptr.hbm [resolvable:$true] %s204
          %s206 = sshll.u32 [#allocation7], 4
          %s207 = int_to_ptr.vmem [resolvable:$true] %s206
          %212 = dma.hbm_to_vmem [thread:$0]  %s205, 512, %s207, [#allocation6], 128, 128, 8
        $region16: #{tpu_custom_call.1} parent=11 // pred_fallthru
          _
        // Predicated region
        $region17: #{tpu_custom_call.1} parent=11 // pred_check
          %p213 = pneg %p116
        $region18: #{tpu_custom_call.1} parent=11 // pred_check_branch
          %215 = sbr.rel (%p213) target = $region20
        $region19: #{tpu_custom_call.1} parent=11 // pred_region
          _
        $region20: #{tpu_custom_call.1} parent=11 // pred_fallthru
          _
        // Predicated region
        $region21: #{tpu_custom_call.1} parent=11 // pred_check
          %p216 = pneg %p137
        $region22: #{tpu_custom_call.1} parent=11 // pred_check_branch
          %218 = sbr.rel (%p216) target = $region24
        $region23: #{tpu_custom_call.1} parent=11 // pred_region
          %220 = vsyncadd [#allocation9], 0
          %s221 = sshll.u32 %s4, 4
          %s222 = int_to_ptr.hbm [resolvable:$true] %s221
          %s223 = sshll.u32 [#allocation8], 4
          %s224 = int_to_ptr.vmem [resolvable:$true] %s223
          %229 = dma.hbm_to_vmem [thread:$0]  %s222, 1024, %s224, [#allocation9], 256, 256, 16
        $region24: #{tpu_custom_call.1} parent=11 // pred_fallthru
          _
        // Predicated region
        $region25: #{tpu_custom_call.1} parent=11 // pred_check
          %p230 = pneg %p158
        $region26: #{tpu_custom_call.1} parent=11 // pred_check_branch
          %232 = sbr.rel (%p230) target = $region28
        $region27: #{tpu_custom_call.1} parent=11 // pred_region
          _
        $region28: #{tpu_custom_call.1} parent=11 // pred_fallthru
          _
      $region12: #{tpu_custom_call.1} parent=5 // pred_fallthru
        _
      %p233 = scmp.lt.s32.totalorder %s22, 4
      // Predicated region
      $region29: #{tpu_custom_call.1} parent=5 // pred_check
        %p234 = pneg %p233
      $region30: #{tpu_custom_call.1} parent=5 // pred_check_branch
        %236 = sbr.rel (%p234) target = $region32
      $region31: #{tpu_custom_call.1} parent=5 // pred_region
        // Predicated region
        $region33: #{tpu_custom_call.1} parent=31 // pred_check
          %p237 = pneg %p42
        $region34: #{tpu_custom_call.1} parent=31 // pred_check_branch
          %239 = sbr.rel (%p237) target = $region36
        $region35: #{tpu_custom_call.1} parent=31 // pred_region
          %s240 = sand.u32 %s32, 1
          %s241 = scalar_lea.sflag [#allocation3], %s240
          %s242 = sand.u32 %s32, 1
          %s243 = smul.addr %s242, 8
          %s244 = scalar_lea.vmem [#allocation2], %s243
          %246 = vsyncadd %s241, 0
          %s247 = smul.addr %s22, 8
          %s248 = scalar_lea.hbm %s0, %s247
          %s250 = sshll.u32 %s248, 4
          %s251 = int_to_ptr.hbm [resolvable:$true] %s250
          %s252 = sshll.u32 %s244, 4
          %s253 = int_to_ptr.vmem [resolvable:$true] %s252
          %255 = dma.hbm_to_vmem [thread:$0]  %s251, 128, %s253, %s241
        $region36: #{tpu_custom_call.1} parent=31 // pred_fallthru
          _
        // Predicated region
        $region37: #{tpu_custom_call.1} parent=31 // pred_check
          %p256 = pneg %p68
        $region38: #{tpu_custom_call.1} parent=31 // pred_check_branch
          %258 = sbr.rel (%p256) target = $region40
        $region39: #{tpu_custom_call.1} parent=31 // pred_region
          %s259 = sand.u32 %s22, 1
          %s260 = scalar_lea.sflag [#allocation6], %s259
          %s261 = sand.u32 %s58, 1
          %s262 = smul.addr %s261, 8
          %s263 = scalar_lea.vmem [#allocation5], %s262
          %265 = vsyncadd %s260, 0
          %s266 = smul.addr %s22, 8
          %s267 = scalar_lea.hbm %s1, %s266
          %s269 = sshll.u32 %s267, 4
          %s270 = int_to_ptr.hbm [resolvable:$true] %s269
          %s271 = sshll.u32 %s263, 4
          %s272 = int_to_ptr.vmem [resolvable:$true] %s271
          %274 = dma.hbm_to_vmem [thread:$0]  %s270, 128, %s272, %s260
        $region40: #{tpu_custom_call.1} parent=31 // pred_fallthru
          _
      $region32: #{tpu_custom_call.1} parent=5 // pred_fallthru
        _
      %p275 = scmp.le.s32.totalorder 1, %s22
      %p276 = scmp.lt.s32.totalorder %s22, 5
      %p277 = pnand %p275, %p276
      %p278 = pneg %p277
      // Predicated region
      $region41: #{tpu_custom_call.1} parent=5 // pred_check
        _
      $region42: #{tpu_custom_call.1} parent=5 // pred_check_branch
        %280 = sbr.rel (%p277) target = $region44
      $region43: #{tpu_custom_call.1} parent=5 // pred_region
        %s281 = ssub.s32 %s22, 1
        %s282 = sand.u32 %s35, 1
        %s283 = scalar_lea.sflag [#allocation3], %s282
        %s284 = sand.u32 %s35, 1
        %s285 = smul.addr %s284, 8
        %s286 = scalar_lea.vmem [#allocation2], %s285
        // Predicated region
        $region45: #{tpu_custom_call.1} parent=43 // pred_check
          %p287 = pneg %p48
        $region46: #{tpu_custom_call.1} parent=43 // pred_check_branch
          %289 = sbr.rel (%p287) target = $region48
        $region47: #{tpu_custom_call.1} parent=43 // pred_region
          %291 = dma.done %s283, 128
        $region48: #{tpu_custom_call.1} parent=43 // pred_fallthru
          _
        %s292 = sand.u32 %s27, 1
        %s293 = scalar_lea.sflag [#allocation6], %s292
        %s294 = sand.u32 %s61, 1
        %s295 = smul.addr %s294, 8
        %s296 = scalar_lea.vmem [#allocation5], %s295
        // Predicated region
        $region49: #{tpu_custom_call.1} parent=43 // pred_check
          %p297 = pneg %p74
        $region50: #{tpu_custom_call.1} parent=43 // pred_check_branch
          %299 = sbr.rel (%p297) target = $region52
        $region51: #{tpu_custom_call.1} parent=43 // pred_region
          %301 = dma.done %s293, 128
        $region52: #{tpu_custom_call.1} parent=43 // pred_fallthru
          _
        // Predicated region
        $region53: #{tpu_custom_call.1} parent=43 // pred_check
          %p302 = pneg %p95
        $region54: #{tpu_custom_call.1} parent=43 // pred_check_branch
          %304 = sbr.rel (%p302) target = $region56
        $region55: #{tpu_custom_call.1} parent=43 // pred_region
          %306 = dma.done [#allocation6], 512
        $region56: #{tpu_custom_call.1} parent=43 // pred_fallthru
          _
        // Predicated region
        $region57: #{tpu_custom_call.1} parent=43 // pred_check
          %p307 = pneg %p137
        $region58: #{tpu_custom_call.1} parent=43 // pred_check_branch
          %309 = sbr.rel (%p307) target = $region60
        $region59: #{tpu_custom_call.1} parent=43 // pred_region
          %311 = dma.done [#allocation9], 1024
        $region60: #{tpu_custom_call.1} parent=43 // pred_fallthru
          _
        %s312 = sand.u32 %s35, 1
        %s313 = scalar_lea.sflag [#allocation3], %s312
        %s314 = sand.u32 %s35, 1
        %s315 = smul.addr %s314, 8
        %s316 = scalar_lea.vmem [#allocation2], %s315
        %p317 = pneg %p48
        %p318 = pneg %p45
        %s319 = sand.u32 %s27, 1
        %s320 = scalar_lea.sflag [#allocation6], %s319
        %s321 = sand.u32 %s61, 1
        %s322 = smul.addr %s321, 8
        %s323 = scalar_lea.vmem [#allocation5], %s322
        %p324 = pneg %p74
        %p325 = pneg %p71
        %p326 = pneg %p95
        %p327 = pneg %p92
        %p328 = pneg %p116
        %p329 = pneg %p113
        %p330 = pneg %p137
        %p331 = pneg %p134
        %p332 = pneg %p158
        %p333 = pneg %p155
        %p334 = pneg %p184
        %p335 = pneg %p181
        %s336 = sand.u32 %s171, 1
        %s337 = scalar_lea.sflag [#allocation4], %s336
        %s338 = sand.u32 %s171, 1
        %s339 = smul.addr %s338, 8
        %s340 = scalar_lea.vmem [#allocation10], %s339
        %v341 = vld [vmem:[%s286] sm:$0xff]
        %v342 = vld [vmem:[%s296] sm:$0xff]
        %v343 = vld [vmem:[#allocation7] sm:$0xff]
        %v344 = vld [vmem:[#allocation7 + $0x8] sm:$0xff]
        %v345 = vld [vmem:[#allocation7 + $0x10] sm:$0xff]
        %v346 = vld [vmem:[#allocation7 + $0x18] sm:$0xff]
        %v347 = vld [vmem:[%s3] sm:$0x1]
        %v349 = vperm.slane %v347, 0
        %vm351 = vcmask 261120
        %v353 = vsel %vm351, %v341, 0
        %355 = vmatpush.msra.mxu0 0.0
        %356 = vmatpush.msra.mxu0 0.0
        %357 = vmatpush.msra.mxu0 0.0
        %358 = vmatpush.msra.mxu0 0.0
        %359 = vmatpush.msra.mxu0 0.0
        %360 = vmatpush.msra.mxu0 0.0
        %361 = vmatpush.msra.mxu0 0.0
        %362 = vmatpush.msra.mxu0 0.0
        %363 = vmatpush.msra.mxu0 0.0
        %364 = vmatpush.msra.mxu0 0.0
        %365 = vmatpush.msra.mxu0 0.0
        %366 = vmatpush.msra.mxu0 0.0
        %367 = vmatpush.msra.mxu0 %v346
        %368 = vmatpush.msra.mxu0 %v345
        %369 = vmatpush.msra.mxu0 %v344
        %370 = vmatpush.msra.mxu0 %v343
        %371 = vmatmul.f32.gmra.mxu0 %v353
        %v372 = vpop.f32.mrf.mxu0
        %v373 = vadd.f32 %v349, %v372
        %374 = vdwg.mxu0
        %v375 = vld [vmem:[#allocation8] sm:$0xff]
        %v376 = vld [vmem:[#allocation8 + $0x8] sm:$0xff]
        %v377 = vld [vmem:[#allocation8 + $0x10] sm:$0xff]
        %v378 = vld [vmem:[#allocation8 + $0x18] sm:$0xff]
        %v379 = vld [vmem:[#allocation8 + $0x20] sm:$0xff]
        %v380 = vld [vmem:[#allocation8 + $0x28] sm:$0xff]
        %v381 = vld [vmem:[#allocation8 + $0x30] sm:$0xff]
        %v382 = vld [vmem:[#allocation8 + $0x38] sm:$0xff]
        %v383 = vld [vmem:[%s5] sm:$0x3]
        %v385 = vperm.slane %v383, 0
        %v386 = vperm.slane %v383, 1
        %v390 = vsel %vm351, %v342, 0
        %392 = vmatpush.msra.mxu0 0.0
        %393 = vmatpush.msra.mxu0 0.0
        %394 = vmatpush.msra.mxu0 0.0
        %395 = vmatpush.msra.mxu0 0.0
        %396 = vmatpush.msra.mxu0 0.0
        %397 = vmatpush.msra.mxu0 0.0
        %398 = vmatpush.msra.mxu0 0.0
        %399 = vmatpush.msra.mxu0 0.0
        %400 = vmatpush.msra.mxu0 0.0
        %401 = vmatpush.msra.mxu0 0.0
        %402 = vmatpush.msra.mxu0 0.0
        %403 = vmatpush.msra.mxu0 0.0
        %404 = vmatpush.msra.mxu0 %v381
        %405 = vmatpush.msra.mxu0 %v379
        %406 = vmatpush.msra.mxu0 %v377
        %407 = vmatpush.msra.mxu0 %v375
        %408 = vmatmul.f32.gmra.mxu0 %v390
        %v409 = vpop.f32.mrf.mxu0
        %v410 = vadd.f32 %v385, %v409
        %411 = vdwg.mxu0
        %412 = vmatpush.msra.mxu0 0.0
        %413 = vmatpush.msra.mxu0 0.0
        %414 = vmatpush.msra.mxu0 0.0
        %415 = vmatpush.msra.mxu0 0.0
        %416 = vmatpush.msra.mxu0 0.0
        %417 = vmatpush.msra.mxu0 0.0
        %418 = vmatpush.msra.mxu0 0.0
        %419 = vmatpush.msra.mxu0 0.0
        %420 = vmatpush.msra.mxu0 0.0
        %421 = vmatpush.msra.mxu0 0.0
        %422 = vmatpush.msra.mxu0 0.0
        %423 = vmatpush.msra.mxu0 0.0
        %424 = vmatpush.msra.mxu0 %v382
        %425 = vmatpush.msra.mxu0 %v380
        %426 = vmatpush.msra.mxu0 %v378
        %427 = vmatpush.msra.mxu0 %v376
        %428 = vmatmul.f32.gmra.mxu0 %v390
        %v429 = vpop.f32.mrf.mxu0
        %v430 = vadd.f32 %v386, %v429
        %431 = vdwg.mxu0
        %432 = vmatpush.xpose.msra.mxu0 0.0
        %433 = vmatpush.xpose.msra.mxu0 0.0
        %434 = vmatpush.xpose.msra.mxu0 0.0
        %435 = vmatpush.xpose.msra.mxu0 0.0
        %436 = vmatpush.xpose.msra.mxu0 0.0
        %437 = vmatpush.xpose.msra.mxu0 0.0
        %438 = vmatpush.xpose.msra.mxu0 0.0
        %439 = vmatpush.xpose.msra.mxu0 0.0
        %440 = vmatpush.xpose.msra.mxu0 0.0
        %441 = vmatpush.xpose.msra.mxu0 0.0
        %442 = vmatpush.xpose.msra.mxu0 0.0
        %443 = vmatpush.xpose.msra.mxu0 0.0
        %444 = vmatpush.xpose.msra.mxu0 0.0
        %445 = vmatpush.xpose.msra.mxu0 0.0
        %446 = vmatpush.xpose.msra.mxu0 0.0
        %447 = vmatpush.xpose.msra.mxu0 %v410
        %448 = vmatmul.f32.gmra.mxu0 %v373
        %v449 = vpop.f32.mrf.mxu0
        %v450 = vadd.f32 0.0, %v449
        %451 = vdwg.mxu0
        %vm452 = vcmask 64512
        %v453 = vsel %vm452, %v450, -inf
        %454 = vmax.xlane.f32.xlu0 %v453
        %v455 = vpop.xlane.xlu0 %454
        %v456 = vsub.f32 %v450, %v455
        %v457 = vmul.f32 %v456, 1.442695
        %v458 = vpow.pop %v457
        %v459 = vsel %vm452, %v458, 0.0
        %460 = vadd.xlane.f32.xlu0 %v459
        %v461 = vpop.xlane.xlu0 %460
        %v462 = vrcp.pop %v461
        %v463 = vmul.f32 %v458, %v462
        %v465 = vsel %vm452, %v463, 0
        %467 = vmatpush.msra.mxu0 0.0
        %468 = vmatpush.msra.mxu0 0.0
        %469 = vmatpush.msra.mxu0 0.0
        %470 = vmatpush.msra.mxu0 0.0
        %471 = vmatpush.msra.mxu0 0.0
        %472 = vmatpush.msra.mxu0 0.0
        %473 = vmatpush.msra.mxu0 0.0
        %474 = vmatpush.msra.mxu0 0.0
        %475 = vmatpush.msra.mxu0 0.0
        %476 = vmatpush.msra.mxu0 0.0
        %477 = vmatpush.msra.mxu0 0.0
        %478 = vmatpush.msra.mxu0 0.0
        %479 = vmatpush.msra.mxu0 0.0
        %480 = vmatpush.msra.mxu0 0.0
        %481 = vmatpush.msra.mxu0 0.0
        %482 = vmatpush.msra.mxu0 %v430
        %483 = vmatmul.f32.gmra.mxu0 %v465
        %v484 = vpop.f32.mrf.mxu0
        %v485 = vadd.f32 0.0, %v484
        %486 = vdwg.mxu0
        %487 = vst [vmem:[%s340] sm:$0xff] %v485
        %s488 = sand.u32 %s171, 1
        %s489 = scalar_lea.sflag [#allocation4], %s488
        %s490 = sand.u32 %s171, 1
        %s491 = smul.addr %s490, 8
        %s492 = scalar_lea.vmem [#allocation10], %s491
        // Predicated region
        $region61: #{tpu_custom_call.1} parent=43 // pred_check
          %p493 = pneg %p181
        $region62: #{tpu_custom_call.1} parent=43 // pred_check_branch
          %495 = sbr.rel (%p493) target = $region64
        $region63: #{tpu_custom_call.1} parent=43 // pred_region
          %497 = vsyncadd %s489, 0
          %s498 = smul.addr %s27, 8
          %s499 = scalar_lea.hbm %s6, %s498
          %s501 = sshll.u32 %s492, 4
          %s502 = int_to_ptr.vmem [resolvable:$true] %s501
          %s503 = sshll.u32 %s499, 4
          %s504 = int_to_ptr.hbm [resolvable:$true] %s503
          %506 = dma.vmem_to_hbm [thread:$0]  %s502, 128, %s504, %s489
        $region64: #{tpu_custom_call.1} parent=43 // pred_fallthru
          _
      $region44: #{tpu_custom_call.1} parent=5 // pred_fallthru
        _
      %p507 = scmp.le.s32.totalorder 2, %s22
      // Predicated region
      $region65: #{tpu_custom_call.1} parent=5 // pred_check
        %p508 = pneg %p507
      $region66: #{tpu_custom_call.1} parent=5 // pred_check_branch
        %510 = sbr.rel (%p508) target = $region68
      $region67: #{tpu_custom_call.1} parent=5 // pred_region
        %s511 = ssub.s32 %s22, 2
        // Predicated region
        $region69: #{tpu_custom_call.1} parent=67 // pred_check
          %p512 = pneg %p187
        $region70: #{tpu_custom_call.1} parent=67 // pred_check_branch
          %514 = sbr.rel (%p512) target = $region72
        $region71: #{tpu_custom_call.1} parent=67 // pred_region
          %s515 = sand.u32 %s172, 1
          %s516 = scalar_lea.sflag [#allocation4], %s515
          %s517 = sand.u32 %s172, 1
          %s518 = smul.addr %s517, 8
          %s519 = scalar_lea.vmem [#allocation10], %s518
          %521 = dma.done %s516, 128
        $region72: #{tpu_custom_call.1} parent=67 // pred_fallthru
          _
      $region68: #{tpu_custom_call.1} parent=5 // pred_fallthru
        _
    $region6: #{tpu_custom_call.1} parent=1 // loop_footer
      %s26 = sadd.s32 1, %s22
    $region7: #{tpu_custom_call.1} parent=1 // loop_footer_branch
      %21 = sbr.rel target = $region3
    $region8: #{tpu_custom_call.1} parent=1 // loop_exit
      _
    %522 = vsyncpa [#allocation3], 1
    %s523 = scalar_lea.sflag [#allocation3], 1
    %524 = vsyncpa %s523, 1
    %525 = vsyncpa [#allocation6], 1
    %s526 = scalar_lea.sflag [#allocation6], 1
    %527 = vsyncpa %s526, 1
    %528 = vsyncpa [#allocation9], 1
    %529 = vsyncpa [#allocation4], 1
    %s530 = scalar_lea.sflag [#allocation4], 1
    %531 = vsyncpa %s530, 1

</llo_original>
